<compile_context>
chip_gen: v5e
topology: v5e:2x2
jax: 0.10.0
libtpu: 0.0.40
codegen_flags: <defaults>
</compile_context>

<pallas_src>
import functools

import jax
import jax.numpy as jnp
from jax.experimental import pallas as pl
from jax.experimental.pallas import tpu as pltpu


def _round_up(n, m):
    return ((n + m - 1) // m) * m


def _choose_batch_tile(B, block_b):
    """Sublane-aligned batch tile; keep >=2 grid steps when batch permits (v7x)."""
    if B <= 8:
        return B                                   # single full-extent block
    half = _round_up(pl.cdiv(B, 2), 8)             # enough for a 2-step grid
    tb = min(_round_up(block_b, 8), half)
    return max(tb, 8)


def prediction_net_kernel(x_ref, w1_ref, b1_ref, w2_ref, b2_ref, w3_ref, b3_ref,
                          out_ref, *, cast_hidden_bf16):
    # Layer 1: Linear + Tanh (MXU with f32 accumulation; bias/tanh in f32).
    h1 = jnp.dot(x_ref[...], w1_ref[...], preferred_element_type=jnp.float32)
    h1 = jnp.tanh(h1 + b1_ref[...])                # (TB, H) f32
    if cast_hidden_bf16:
        h1 = h1.astype(jnp.bfloat16)

    # Layer 2: Linear + Tanh.
    h2 = jnp.dot(h1, w2_ref[...], preferred_element_type=jnp.float32)
    h2 = jnp.tanh(h2 + b2_ref[...])                # (TB, H) f32
    if cast_hidden_bf16:
        h2 = h2.astype(jnp.bfloat16)

    # Prediction head: Linear(H, D_out) — full D_out columns stored at once.
    pred = jnp.dot(h2, w3_ref[...], preferred_element_type=jnp.float32)
    out_ref[...] = (pred + b3_ref[...]).astype(out_ref.dtype)


def prediction_net_forward(x, params, *, block_b=4096, use_bf16=False):
    """x: (B, input_dim) float32.  Returns (state_prediction, reward_prediction)."""
    w1, b1, w2, b2, w3, b3 = (params["w1"], params["b1"], params["w2"],
                              params["b2"], params["w3"], params["b3"])
    B, D_in = x.shape
    H = w1.shape[1]
    D_out = w3.shape[1]

    # bf16 I/O conversion happens once, at the HBM boundary (wrapper), so the
    # kernel never re-casts the VMEM-resident weights per grid step.
    if use_bf16:
        mm_dtype = jnp.bfloat16
        x = x.astype(mm_dtype)
        w1 = w1.astype(mm_dtype)
        w2 = w2.astype(mm_dtype)
        w3 = w3.astype(mm_dtype)
    else:
        mm_dtype = x.dtype
    # Biases stay f32 (added post-accumulation).

    tb = _choose_batch_tile(B, block_b)
    grid = (pl.cdiv(B, tb),)

    # VMEM budget: x/out tiles double-buffered + resident weights (x2 headroom).
    itm = jnp.dtype(mm_dtype).itemsize
    x_tile_bytes = tb * D_in * itm
    out_tile_bytes = tb * D_out * 4
    weight_bytes = (D_in * H + H * H + H * D_out) * itm + (2 * H + D_out) * 4
    vmem_needed = 2 * (x_tile_bytes + out_tile_bytes) + 2 * weight_bytes
    vmem_limit = int(min(32 * 1024 * 1024, max(8 * 1024 * 1024, 2 * vmem_needed)))

    # Advisory cost estimate so XLA can schedule around this custom call.
    flops = 2 * B * (D_in * H + H * H + H * D_out)
    bytes_accessed = (B * D_in * itm + weight_bytes + B * D_out * 4)
    cost = pl.CostEstimate(flops=flops,
                           transcendentals=2 * B * H,
                           bytes_accessed=bytes_accessed)

    pred = pl.pallas_call(
        functools.partial(prediction_net_kernel, cast_hidden_bf16=use_bf16),
        out_shape=jax.ShapeDtypeStruct((B, D_out), jnp.float32),
        grid=grid,
        in_specs=[
            pl.BlockSpec((tb, D_in), lambda i: (i, 0)),     # x, tiled over batch
            pl.BlockSpec((D_in, H), lambda i: (0, 0)),      # w1 (VMEM-resident)
            pl.BlockSpec((1, H), lambda i: (0, 0)),         # b1
            pl.BlockSpec((H, H), lambda i: (0, 0)),         # w2
            pl.BlockSpec((1, H), lambda i: (0, 0)),         # b2
            pl.BlockSpec((H, D_out), lambda i: (0, 0)),     # w3
            pl.BlockSpec((1, D_out), lambda i: (0, 0)),     # b3
        ],
        out_specs=pl.BlockSpec((tb, D_out), lambda i: (i, 0)),
        compiler_params=pltpu.CompilerParams(
            dimension_semantics=("parallel",),
            vmem_limit_bytes=vmem_limit,
        ),
        cost_estimate=cost,
    )(x, w1, b1, w2, b2, w3, b3)

    state_prediction = pred[:, :-1]       # (B, D_out - 1)
    reward_prediction = pred[:, -1]       # (B,)
    return state_prediction, reward_prediction


def init_params(key, input_dim, hidden_dim, output_dim):
    """Deterministic synthetic parameters (same shapes as the PyTorch module)."""
    k1, k2, k3, k4, k5, k6 = jax.random.split(key, 6)
    s1 = 1.0 / jnp.sqrt(input_dim)
    s2 = 1.0 / jnp.sqrt(hidden_dim)
    return {
        # Linear(input_dim, hidden_dim): stored as (in, out)
        "w1": jax.random.uniform(k1, (input_dim, hidden_dim), jnp.float32, -s1, s1),
        "b1": jax.random.uniform(k2, (1, hidden_dim), jnp.float32, -s1, s1),
        # Linear(hidden_dim, hidden_dim)
        "w2": jax.random.uniform(k3, (hidden_dim, hidden_dim), jnp.float32, -s2, s2),
        "b2": jax.random.uniform(k4, (1, hidden_dim), jnp.float32, -s2, s2),
        # Linear(hidden_dim, output_dim)
        "w3": jax.random.uniform(k5, (hidden_dim, output_dim), jnp.float32, -s2, s2),
        "b3": jax.random.uniform(k6, (1, output_dim), jnp.float32, -s2, s2),
    }


def prediction_net_ref(x, params):
    """Pure-JAX reference of the PyTorch forward pass."""
    h1 = jnp.tanh(x @ params["w1"] + params["b1"])
    h2 = jnp.tanh(h1 @ params["w2"] + params["b2"])
    pred = h2 @ params["w3"] + params["b3"]
    return pred[:, :-1], pred[:, -1]


if __name__ == "__main__":
    # Small shapes consistent with PredictionNet(input_dim=16, hidden_dim=32,
    # output_dim=17) -> state_prediction (B, 16), reward_prediction (B,).
    batch, input_dim, hidden_dim, output_dim = 8, 16, 32, 17

    key = jax.random.PRNGKey(0)
    kx, kp = jax.random.split(key)
    x = jax.random.normal(kx, (batch, input_dim), dtype=jnp.float32)
    params = init_params(kp, input_dim, hidden_dim, output_dim)

    state_ref, reward_ref = prediction_net_ref(x, params)

    # Exact-precision path (f32 matmuls): must match the reference closely.
    state_f32, reward_f32 = prediction_net_forward(x, params, use_bf16=False)
    state_f32 = jax.block_until_ready(state_f32)
    reward_f32 = jax.block_until_ready(reward_f32)
    assert state_f32.shape == (batch, output_dim - 1)
    assert reward_f32.shape == (batch,)
    assert jnp.allclose(state_f32, state_ref, atol=1e-5, rtol=1e-5)
    assert jnp.allclose(reward_f32, reward_ref, atol=1e-5, rtol=1e-5)

    # bf16 I/O + f32 accumulation path (memory-traffic optimized): loose check.
    state_bf, reward_bf = prediction_net_forward(x, params, use_bf16=True)
    state_bf = jax.block_until_ready(state_bf)
    reward_bf = jax.block_until_ready(reward_bf)
    assert jnp.allclose(state_bf, state_ref, atol=5e-2, rtol=5e-2)
    assert jnp.allclose(reward_bf, reward_ref, atol=5e-2, rtol=5e-2)

    print("KERNEL_OK")
</pallas_src>

<mosaic_0001>
module attributes {stable_mosaic.version = 11 : i64} {
  func.func @prediction_net_kernel(%arg0: i32, %arg1: memref<8x16xf32, #tpu.memory_space<vmem>>, %arg2: memref<16x32xf32, #tpu.memory_space<vmem>>, %arg3: memref<1x32xf32, #tpu.memory_space<vmem>>, %arg4: memref<32x32xf32, #tpu.memory_space<vmem>>, %arg5: memref<1x32xf32, #tpu.memory_space<vmem>>, %arg6: memref<32x17xf32, #tpu.memory_space<vmem>>, %arg7: memref<1x17xf32, #tpu.memory_space<vmem>>, %arg8: memref<8x17xf32, #tpu.memory_space<vmem>>) attributes {dimension_semantics = [#tpu.dimension_semantics<parallel>], iteration_bounds = array<i64: 1>, scalar_prefetch = 0 : i64, scratch_operands = 0 : i64, tpu.core_type = #tpu.core_type<tc>, window_params = [{transform_indices = @transform_0, window_bounds = array<i64: 8, 16>}, {pipeline_mode = #tpu.pipeline_mode<synchronous>, transform_indices = @transform_1, window_bounds = array<i64: 16, 32>}, {pipeline_mode = #tpu.pipeline_mode<synchronous>, transform_indices = @transform_2, window_bounds = array<i64: 1, 32>}, {pipeline_mode = #tpu.pipeline_mode<synchronous>, transform_indices = @transform_3, window_bounds = array<i64: 32, 32>}, {pipeline_mode = #tpu.pipeline_mode<synchronous>, transform_indices = @transform_4, window_bounds = array<i64: 1, 32>}, {pipeline_mode = #tpu.pipeline_mode<synchronous>, transform_indices = @transform_5, window_bounds = array<i64: 32, 17>}, {pipeline_mode = #tpu.pipeline_mode<synchronous>, transform_indices = @transform_6, window_bounds = array<i64: 1, 17>}, {transform_indices = @transform_7, window_bounds = array<i64: 8, 17>}]} {
    %c0 = arith.constant 0 : index
    %c0_0 = arith.constant 0 : index
    %0 = vector.load %arg1[%c0, %c0_0] : memref<8x16xf32, #tpu.memory_space<vmem>>, vector<8x16xf32>
    %c0_1 = arith.constant 0 : index
    %c0_2 = arith.constant 0 : index
    %1 = vector.load %arg2[%c0_1, %c0_2] : memref<16x32xf32, #tpu.memory_space<vmem>>, vector<16x32xf32>
    %cst = arith.constant dense<0.000000e+00> : vector<8x32xf32>
    %2 = tpu.matmul %0, %1, %cst {dimension_numbers = #tpu.dot_dimension_numbers<[1], [0], [0], [1], [0, 0, 1, 1], [], []>} : vector<8x16xf32>, vector<16x32xf32>, vector<8x32xf32> -> vector<8x32xf32>
    %c0_3 = arith.constant 0 : index
    %c0_4 = arith.constant 0 : index
    %3 = vector.load %arg3[%c0_3, %c0_4] : memref<1x32xf32, #tpu.memory_space<vmem>>, vector<1x32xf32>
    %4 = vector.broadcast %3 : vector<1x32xf32> to vector<8x32xf32>
    %5 = arith.addf %2, %4 : vector<8x32xf32>
    %6 = math.tanh %5 : vector<8x32xf32>
    %c0_5 = arith.constant 0 : index
    %c0_6 = arith.constant 0 : index
    %7 = vector.load %arg4[%c0_5, %c0_6] : memref<32x32xf32, #tpu.memory_space<vmem>>, vector<32x32xf32>
    %cst_7 = arith.constant dense<0.000000e+00> : vector<8x32xf32>
    %8 = tpu.matmul %6, %7, %cst_7 {dimension_numbers = #tpu.dot_dimension_numbers<[1], [0], [0], [1], [0, 0, 1, 1], [], []>} : vector<8x32xf32>, vector<32x32xf32>, vector<8x32xf32> -> vector<8x32xf32>
    %c0_8 = arith.constant 0 : index
    %c0_9 = arith.constant 0 : index
    %9 = vector.load %arg5[%c0_8, %c0_9] : memref<1x32xf32, #tpu.memory_space<vmem>>, vector<1x32xf32>
    %10 = vector.broadcast %9 : vector<1x32xf32> to vector<8x32xf32>
    %11 = arith.addf %8, %10 : vector<8x32xf32>
    %12 = math.tanh %11 : vector<8x32xf32>
    %c0_10 = arith.constant 0 : index
    %c0_11 = arith.constant 0 : index
    %13 = vector.load %arg6[%c0_10, %c0_11] : memref<32x17xf32, #tpu.memory_space<vmem>>, vector<32x17xf32>
    %cst_12 = arith.constant dense<0.000000e+00> : vector<8x17xf32>
    %14 = tpu.matmul %12, %13, %cst_12 {dimension_numbers = #tpu.dot_dimension_numbers<[1], [0], [0], [1], [0, 0, 1, 1], [], []>} : vector<8x32xf32>, vector<32x17xf32>, vector<8x17xf32> -> vector<8x17xf32>
    %c0_13 = arith.constant 0 : index
    %c0_14 = arith.constant 0 : index
    %15 = vector.load %arg7[%c0_13, %c0_14] : memref<1x17xf32, #tpu.memory_space<vmem>>, vector<1x17xf32>
    %16 = vector.broadcast %15 : vector<1x17xf32> to vector<8x17xf32>
    %17 = arith.addf %14, %16 : vector<8x17xf32>
    %c0_15 = arith.constant 0 : index
    %c0_16 = arith.constant 0 : index
    %18 = vector.load %arg8[%c0_15, %c0_16] : memref<8x17xf32, #tpu.memory_space<vmem>>, vector<8x17xf32>
    tpu.vector_store %arg8[%c0_15, %c0_16], %17 {strides = array<i32>} : memref<8x17xf32, #tpu.memory_space<vmem>>, vector<8x17xf32>,
    return
  }
  func.func @transform_0(%arg0: i32) -> (i32, i32) {
    %c0_i32 = arith.constant 0 : i32
    %c0_i32_0 = arith.constant 0 : i32
    return %arg0, %c0_i32 : i32, i32
  }
  func.func @transform_1(%arg0: i32) -> (i32, i32) {
    %c0_i32 = arith.constant 0 : i32
    %c0_i32_0 = arith.constant 0 : i32
    %c0_i32_1 = arith.constant 0 : i32
    return %c0_i32, %c0_i32_0 : i32, i32
  }
  func.func @transform_2(%arg0: i32) -> (i32, i32) {
    %c0_i32 = arith.constant 0 : i32
    %c0_i32_0 = arith.constant 0 : i32
    %c0_i32_1 = arith.constant 0 : i32
    return %c0_i32, %c0_i32_0 : i32, i32
  }
  func.func @transform_3(%arg0: i32) -> (i32, i32) {
    %c0_i32 = arith.constant 0 : i32
    %c0_i32_0 = arith.constant 0 : i32
    %c0_i32_1 = arith.constant 0 : i32
    return %c0_i32, %c0_i32_0 : i32, i32
  }
  func.func @transform_4(%arg0: i32) -> (i32, i32) {
    %c0_i32 = arith.constant 0 : i32
    %c0_i32_0 = arith.constant 0 : i32
    %c0_i32_1 = arith.constant 0 : i32
    return %c0_i32, %c0_i32_0 : i32, i32
  }
  func.func @transform_5(%arg0: i32) -> (i32, i32) {
    %c0_i32 = arith.constant 0 : i32
    %c0_i32_0 = arith.constant 0 : i32
    %c0_i32_1 = arith.constant 0 : i32
    return %c0_i32, %c0_i32_0 : i32, i32
  }
  func.func @transform_6(%arg0: i32) -> (i32, i32) {
    %c0_i32 = arith.constant 0 : i32
    %c0_i32_0 = arith.constant 0 : i32
    %c0_i32_1 = arith.constant 0 : i32
    return %c0_i32, %c0_i32_0 : i32, i32
  }
  func.func @transform_7(%arg0: i32) -> (i32, i32) {
    %c0_i32 = arith.constant 0 : i32
    %c0_i32_0 = arith.constant 0 : i32
    return %arg0, %c0_i32 : i32, i32
  }
}

</mosaic_0001>

<llo_original>
// kernel: tpu_custom_call.1
$region0: #{tpu_custom_call.1}
  #allocation0 [shape = 'u32[]', space=smem, size = 0x4, offset = 0x4, fixed_abs, tag = 'smem constant byte address 0x4 - core index']
  #allocation1 [shape = 'u32[72,128]{1,0:T(1,128)}', space=vmem, size = 0x9000, scoped, tag = 'internal scratch']
  %s0 = inlined_call_operand.vmem [shape: f32[8,16], index: 0, kind: input, shape index: {}]
  %s1 = inlined_call_operand.vmem [shape: f32[16,32], index: 1, kind: input, shape index: {}]
  %s2 = inlined_call_operand.vmem [shape: f32[1,32], index: 2, kind: input, shape index: {}]
  %s3 = inlined_call_operand.vmem [shape: f32[32,32], index: 3, kind: input, shape index: {}]
  %s4 = inlined_call_operand.vmem [shape: f32[1,32], index: 4, kind: input, shape index: {}]
  %s5 = inlined_call_operand.vmem [shape: f32[32,17], index: 5, kind: input, shape index: {}]
  %s6 = inlined_call_operand.vmem [shape: f32[1,17], index: 6, kind: input, shape index: {}]
  %s7 = inlined_call_operand.hbm [shape: f32[8,17], index: 7, kind: output, shape index: {}]
  %s8 = sld [smem:[#allocation0]]
  $region38: #{tpu_custom_call.1} parent=0
    _
  %s10 = ssub.s32 1, %s8
  %s11 = scalar_select 0, %s10, %s8
  $region1: #{tpu_custom_call.1} parent=0
    #allocation2 [shape = 'u8[4096]{0}', space=vmem, size = 0x1000, scoped, tag = 'output window, operand 0, single buffered']
    #allocation3 [shape = 's32[1]{0}', space=sflag, size = 0x4, scoped, tag = 'scoped memory for tpu_custom_call.1']
    %12 = vsyncpa [#allocation3], 0
    // Predicated region
    $region2: #{tpu_custom_call.1} parent=1 // pred_check
      _
    $region3: #{tpu_custom_call.1} parent=1 // pred_check_branch
      %14 = sbr.rel (0) target = $region5
    $region4: #{tpu_custom_call.1} parent=1 // pred_region
      _
    $region5: #{tpu_custom_call.1} parent=1 // pred_fallthru
      _
    // Predicated region
    $region6: #{tpu_custom_call.1} parent=1 // pred_check
      _
    $region7: #{tpu_custom_call.1} parent=1 // pred_check_branch
      %16 = sbr.rel (0) target = $region9
    $region8: #{tpu_custom_call.1} parent=1 // pred_region
      _
    $region9: #{tpu_custom_call.1} parent=1 // pred_fallthru
      _
    // Predicated region
    $region10: #{tpu_custom_call.1} parent=1 // pred_check
      _
    $region11: #{tpu_custom_call.1} parent=1 // pred_check_branch
      %18 = sbr.rel (0) target = $region13
    $region12: #{tpu_custom_call.1} parent=1 // pred_region
      _
    $region13: #{tpu_custom_call.1} parent=1 // pred_fallthru
      _
    // Predicated region
    $region14: #{tpu_custom_call.1} parent=1 // pred_check
      _
    $region15: #{tpu_custom_call.1} parent=1 // pred_check_branch
      %20 = sbr.rel (0) target = $region17
    $region16: #{tpu_custom_call.1} parent=1 // pred_region
      _
    $region17: #{tpu_custom_call.1} parent=1 // pred_fallthru
      _
    // Predicated region
    $region18: #{tpu_custom_call.1} parent=1 // pred_check
      _
    $region19: #{tpu_custom_call.1} parent=1 // pred_check_branch
      %22 = sbr.rel (0) target = $region21
    $region20: #{tpu_custom_call.1} parent=1 // pred_region
      _
    $region21: #{tpu_custom_call.1} parent=1 // pred_fallthru
      _
    // Predicated region
    $region22: #{tpu_custom_call.1} parent=1 // pred_check
      _
    $region23: #{tpu_custom_call.1} parent=1 // pred_check_branch
      %24 = sbr.rel (0) target = $region25
    $region24: #{tpu_custom_call.1} parent=1 // pred_region
      _
    $region25: #{tpu_custom_call.1} parent=1 // pred_fallthru
      _
    // Predicated region
    $region26: #{tpu_custom_call.1} parent=1 // pred_check
      _
    $region27: #{tpu_custom_call.1} parent=1 // pred_check_branch
      %26 = sbr.rel (0) target = $region29
    $region28: #{tpu_custom_call.1} parent=1 // pred_region
      _
    $region29: #{tpu_custom_call.1} parent=1 // pred_fallthru
      _
    %v27 = vld [vmem:[%s0] sm:$0xff]
    %v28 = vld [vmem:[%s1] sm:$0xff]
    %v29 = vld [vmem:[%s1 + $0x8] sm:$0xff]
    %v30 = vld [vmem:[%s2] sm:$0x1]
    %v32 = vperm.slane %v30, 0
    %vm34 = vcmask 130048
    %v36 = vsel %vm34, %v27, 0
    %38 = vmatpush.msra.mxu0 0.0
    %39 = vmatpush.msra.mxu0 0.0
    %40 = vmatpush.msra.mxu0 0.0
    %41 = vmatpush.msra.mxu0 0.0
    %42 = vmatpush.msra.mxu0 0.0
    %43 = vmatpush.msra.mxu0 0.0
    %44 = vmatpush.msra.mxu0 0.0
    %45 = vmatpush.msra.mxu0 0.0
    %46 = vmatpush.msra.mxu0 0.0
    %47 = vmatpush.msra.mxu0 0.0
    %48 = vmatpush.msra.mxu0 0.0
    %49 = vmatpush.msra.mxu0 0.0
    %50 = vmatpush.msra.mxu0 0.0
    %51 = vmatpush.msra.mxu0 0.0
    %52 = vmatpush.msra.mxu0 %v29
    %53 = vmatpush.msra.mxu0 %v28
    %54 = vmatmul.f32.gmra.mxu0 %v36
    %v55 = vpop.f32.mrf.mxu0
    %v56 = vadd.f32 %v32, %v55
    %57 = vdwg.mxu0
    %v58 = vtanh.pop %v56
    %v59 = vld [vmem:[%s3] sm:$0xff]
    %v60 = vld [vmem:[%s3 + $0x8] sm:$0xff]
    %v61 = vld [vmem:[%s3 + $0x10] sm:$0xff]
    %v62 = vld [vmem:[%s3 + $0x18] sm:$0xff]
    %v63 = vld [vmem:[%s4] sm:$0x1]
    %v65 = vperm.slane %v63, 0
    %vm67 = vcmask 261120
    %v69 = vsel %vm67, %v58, 0
    %71 = vmatpush.msra.mxu0 0.0
    %72 = vmatpush.msra.mxu0 0.0
    %73 = vmatpush.msra.mxu0 0.0
    %74 = vmatpush.msra.mxu0 0.0
    %75 = vmatpush.msra.mxu0 0.0
    %76 = vmatpush.msra.mxu0 0.0
    %77 = vmatpush.msra.mxu0 0.0
    %78 = vmatpush.msra.mxu0 0.0
    %79 = vmatpush.msra.mxu0 0.0
    %80 = vmatpush.msra.mxu0 0.0
    %81 = vmatpush.msra.mxu0 0.0
    %82 = vmatpush.msra.mxu0 0.0
    %83 = vmatpush.msra.mxu0 %v62
    %84 = vmatpush.msra.mxu0 %v61
    %85 = vmatpush.msra.mxu0 %v60
    %86 = vmatpush.msra.mxu0 %v59
    %87 = vmatmul.f32.gmra.mxu0 %v69
    %v88 = vpop.f32.mrf.mxu0
    %v89 = vadd.f32 %v65, %v88
    %90 = vdwg.mxu0
    %v91 = vtanh.pop %v89
    %v92 = vld [vmem:[%s5] sm:$0xff]
    %v93 = vld [vmem:[%s5 + $0x8] sm:$0xff]
    %v94 = vld [vmem:[%s5 + $0x10] sm:$0xff]
    %v95 = vld [vmem:[%s5 + $0x18] sm:$0xff]
    %v96 = vld [vmem:[%s6] sm:$0x1]
    %v98 = vperm.slane %v96, 0
    %v101 = vsel %vm67, %v91, 0
    %103 = vmatpush.msra.mxu0 0.0
    %104 = vmatpush.msra.mxu0 0.0
    %105 = vmatpush.msra.mxu0 0.0
    %106 = vmatpush.msra.mxu0 0.0
    %107 = vmatpush.msra.mxu0 0.0
    %108 = vmatpush.msra.mxu0 0.0
    %109 = vmatpush.msra.mxu0 0.0
    %110 = vmatpush.msra.mxu0 0.0
    %111 = vmatpush.msra.mxu0 0.0
    %112 = vmatpush.msra.mxu0 0.0
    %113 = vmatpush.msra.mxu0 0.0
    %114 = vmatpush.msra.mxu0 0.0
    %115 = vmatpush.msra.mxu0 %v95
    %116 = vmatpush.msra.mxu0 %v94
    %117 = vmatpush.msra.mxu0 %v93
    %118 = vmatpush.msra.mxu0 %v92
    %119 = vmatmul.f32.gmra.mxu0 %v101
    %v120 = vpop.f32.mrf.mxu0
    %v121 = vadd.f32 %v98, %v120
    %122 = vdwg.mxu0
    %vm123 = vcmask 138240
    %124 = vst.msk [vmem:[#allocation2] sm:$0xff] %vm123, %v121
    // Predicated region
    $region30: #{tpu_custom_call.1} parent=1 // pred_check
      _
    $region31: #{tpu_custom_call.1} parent=1 // pred_check_branch
      %126 = sbr.rel (0) target = $region33
    $region32: #{tpu_custom_call.1} parent=1 // pred_region
      %128 = vsyncadd [#allocation3], 0
      %s130 = sshll.u32 [#allocation2], 4
      %s131 = int_to_ptr.vmem [resolvable:$true] %s130
      %s132 = sshll.u32 %s7, 4
      %s133 = int_to_ptr.hbm [resolvable:$true] %s132
      %135 = dma.vmem_to_hbm [thread:$0]  %s131, 128, %s133, [#allocation3]
    $region33: #{tpu_custom_call.1} parent=1 // pred_fallthru
      _
    // Predicated region
    $region34: #{tpu_custom_call.1} parent=1 // pred_check
      _
    $region35: #{tpu_custom_call.1} parent=1 // pred_check_branch
      %137 = sbr.rel (0) target = $region37
    $region36: #{tpu_custom_call.1} parent=1 // pred_region
      %139 = dma.done [#allocation3], 128
    $region37: #{tpu_custom_call.1} parent=1 // pred_fallthru
      _
    %140 = vsyncpa [#allocation3], 1

</llo_original>
